<compile_context>
chip_gen: v6e
topology: v6e:2x2x1
jax: 0.10.0
libtpu: 0.0.40
codegen_flags: <defaults>
</compile_context>

<pallas_src>
import functools

import jax
import jax.numpy as jnp
from jax.experimental import pallas as pl
from jax.experimental.pallas import tpu as pltpu

EPS = 1e-5  # nn.LayerNorm default


def _round_up(a, b):
    return (a + b - 1) // b * b


def _prenorm_linear_kernel(x_ref, g_ref, b_ref, w_ref, bias_ref, o_ref, y_ref):
    """One (row_tile, col_tile) output block of Linear(LayerNorm(x)).

    Grid = (row tiles, output-column tiles).  The column axis is sequential,
    so the normalized row tile is computed once (j == 0) and cached in the
    `y_ref` VMEM scratch for all subsequent column tiles of the same row tile.
    """

    @pl.when(pl.program_id(1) == 0)
    def _():
        # LayerNorm over the last dim: f32 statistics, biased variance (torch).
        x = x_ref[...].astype(jnp.float32)
        mean = jnp.mean(x, axis=-1, keepdims=True)
        xc = x - mean
        var = jnp.mean(xc * xc, axis=-1, keepdims=True)
        xn = xc * jax.lax.rsqrt(var + EPS)
        y = xn * g_ref[...].astype(jnp.float32) + b_ref[...].astype(jnp.float32)
        y_ref[...] = y.astype(y_ref.dtype)

    # fn := Linear(D, DOUT); operands share the matmul dtype, f32 accumulate.
    out = jnp.dot(y_ref[...], w_ref[...], preferred_element_type=jnp.float32)
    out = out + bias_ref[...].astype(jnp.float32)
    o_ref[...] = out.astype(o_ref.dtype)


def _vmem_budget_bytes():
    """Generation-aware VMEM budget: physical capacity minus headroom."""
    try:
        cap = int(pltpu.get_tpu_info().vmem_capacity_bytes)
    except Exception:
        cap = 64 << 20  # conservative fallback: v7x per-TensorCore VMEM
    return max(min(int(cap * 0.82), cap - (8 << 20)), 16 << 20)


def _pick_tiles(rows_aligned, D, dout_p, row_align, x_bytes, c_bytes, o_bytes,
                budget):
    """Pick (row_tile, col_tile).

    Policy: maximize row_tile first (the weight matrix is re-read from HBM
    once per row tile, and x / LN work are amortized per row tile), then take
    the widest column tile that fits (lane-dense, unmasked stores; col_tile ==
    dout_p means W is streamed exactly once per row tile).
    """

    def need(rt, ct):
        return (2 * rt * D * x_bytes          # x tile, double-buffered
                + 2 * D * ct * c_bytes        # W tile, double-buffered
                + 2 * rt * ct * o_bytes       # out tile, double-buffered
                + rt * D * c_bytes            # LN-result scratch (single buffer)
                + 2 * (2 * D + ct) * 4)       # gamma / beta / bias (f32 bound)

    row_cands = [r for r in (1024, 512, 256, 128, 64, 32, 16, 8)
                 if r % row_align == 0]
    col_cands = [dout_p // k for k in (1, 2, 4, 8, 16)
                 if dout_p % k == 0 and (dout_p // k) % 128 == 0]

    for r in row_cands:
        rt = min(r, rows_aligned)
        for ct in col_cands:  # descending: widest column tile first
            if need(rt, ct) <= budget:
                return rt, ct
    # Fallback for pathologically large D: smallest legal tiles.
    return min(row_align, rows_aligned), col_cands[-1]


@functools.partial(jax.jit, static_argnames=("bf16_matmul",))
def prenorm_linear(x, gamma, beta, w, bias, *, bf16_matmul=False):
    """x: (B, N, D) -> (B, N, DOUT);  fn(LayerNorm(x)) with fn = Linear."""
    B, N, D = x.shape
    D_w, DOUT = w.shape
    assert D_w == D

    out_dtype = x.dtype
    compute_dtype = w.dtype
    if bf16_matmul and w.dtype == jnp.float32:
        # Flag-gated: bf16 operands + f32 accumulate = native MXU path.
        compute_dtype = jnp.bfloat16

    x_bytes = jnp.dtype(x.dtype).itemsize
    c_bytes = jnp.dtype(compute_dtype).itemsize
    o_bytes = jnp.dtype(out_dtype).itemsize
    row_align = 8 * max(1, 4 // min(x_bytes, c_bytes, o_bytes))

    rows = B * N
    rows_aligned = _round_up(rows, row_align)
    dout_p = _round_up(DOUT, 128)  # lane-dense output stores

    budget = _vmem_budget_bytes()
    row_tile, col_tile = _pick_tiles(rows_aligned, D, dout_p, row_align,
                                     x_bytes, c_bytes, o_bytes, budget)

    rows_p = _round_up(rows, row_tile)
    # col_tile divides dout_p by construction.

    x2 = x.reshape(rows, D)
    if rows_p != rows:
        # Zero rows are safe through LayerNorm (var=0 -> rsqrt(eps) is finite)
        # and are sliced off afterwards.
        x2 = jnp.pad(x2, ((0, rows_p - rows), (0, 0)))
    gamma2 = gamma.reshape(1, D)
    beta2 = beta.reshape(1, D)

    w_p = w.astype(compute_dtype)
    bias_p = bias.reshape(1, DOUT)
    if dout_p != DOUT:
        w_p = jnp.pad(w_p, ((0, 0), (0, dout_p - DOUT)))
        bias_p = jnp.pad(bias_p, ((0, 0), (0, dout_p - DOUT)))

    grid = (rows_p // row_tile, dout_p // col_tile)
    n_row_tiles = grid[0]

    # Real double-buffered tile footprint + 25% headroom, capped by the budget.
    tile_vmem = (2 * row_tile * D * x_bytes
                 + 2 * D * col_tile * c_bytes
                 + 2 * row_tile * col_tile * o_bytes
                 + row_tile * D * c_bytes
                 + 2 * (2 * D + col_tile) * 4)
    vmem_limit = int(min(budget, max(tile_vmem * 5 // 4 + (2 << 20), 16 << 20)))

    cost = pl.CostEstimate(
        flops=2 * rows_p * D * dout_p,
        transcendentals=rows_p,
        bytes_accessed=int(
            rows_p * D * x_bytes                       # x read once per row tile
            + rows_p * dout_p * o_bytes                # output written once
            + n_row_tiles * (D * dout_p + dout_p) * c_bytes  # W/bias re-stream
            + 2 * D * 4),                              # gamma, beta
    )

    out2 = pl.pallas_call(
        _prenorm_linear_kernel,
        out_shape=jax.ShapeDtypeStruct((rows_p, dout_p), out_dtype),
        grid_spec=pltpu.PrefetchScalarGridSpec(
            num_scalar_prefetch=0,
            grid=grid,
            in_specs=[
                pl.BlockSpec((row_tile, D), lambda i, j: (i, 0)),   # x tile
                pl.BlockSpec((1, D), lambda i, j: (0, 0)),          # gamma
                pl.BlockSpec((1, D), lambda i, j: (0, 0)),          # beta
                pl.BlockSpec((D, col_tile), lambda i, j: (0, j)),   # W column tile
                pl.BlockSpec((1, col_tile), lambda i, j: (0, j)),   # bias tile
            ],
            out_specs=pl.BlockSpec((row_tile, col_tile), lambda i, j: (i, j)),
            scratch_shapes=[pltpu.VMEM((row_tile, D), compute_dtype)],
        ),
        compiler_params=pltpu.CompilerParams(
            # i: tokens -> shardable across v7x's two TensorCores.
            # j: output columns -> must be sequential so the LN scratch written
            #    at j == 0 is valid for j > 0.
            dimension_semantics=("parallel", "arbitrary"),
            vmem_limit_bytes=vmem_limit,
        ),
        cost_estimate=cost,
    )(x2, gamma2, beta2, w_p, bias_p)

    return out2[:rows, :DOUT].reshape(B, N, DOUT)


def _reference(x, gamma, beta, w, bias):
    xf = x.astype(jnp.float32)
    mean = jnp.mean(xf, axis=-1, keepdims=True)
    var = jnp.mean((xf - mean) ** 2, axis=-1, keepdims=True)
    xn = (xf - mean) * jax.lax.rsqrt(var + EPS)
    y = xn * gamma.astype(jnp.float32) + beta.astype(jnp.float32)
    return y @ w.astype(jnp.float32) + bias.astype(jnp.float32)


if __name__ == "__main__":
    # Small shapes: batch=2, seq=8, dim=32 (LayerNorm dim), fn = Linear(32, 32)
    B, N, D, DOUT = 2, 8, 32, 32

    key = jax.random.PRNGKey(0)
    kx, kg, kb, kw, kbias = jax.random.split(key, 5)

    x = jax.random.normal(kx, (B, N, D), dtype=jnp.float32)
    gamma = 1.0 + 0.05 * jax.random.normal(kg, (D,), dtype=jnp.float32)
    beta = 0.05 * jax.random.normal(kb, (D,), dtype=jnp.float32)
    w = jax.random.normal(kw, (D, DOUT), dtype=jnp.float32) / jnp.sqrt(D)
    bias = 0.05 * jax.random.normal(kbias, (DOUT,), dtype=jnp.float32)

    ref = _reference(x, gamma, beta, w, bias).astype(jnp.float32)

    # f32 path (exact vs. reference).
    out = prenorm_linear(x, gamma, beta, w, bias)
    jax.block_until_ready(out)
    assert out.shape == (B, N, DOUT)
    assert jnp.allclose(out.astype(jnp.float32), ref, atol=1e-4, rtol=1e-4), \
        "f32 mismatch vs reference"

    # bf16 path (native MXU dtype on v6e/v7x): operands stay bf16 into the dot.
    xb = x.astype(jnp.bfloat16)
    out_b = prenorm_linear(
        xb, gamma.astype(jnp.bfloat16), beta.astype(jnp.bfloat16),
        w.astype(jnp.bfloat16), bias.astype(jnp.bfloat16))
    jax.block_until_ready(out_b)
    assert out_b.shape == (B, N, DOUT)
    assert jnp.allclose(out_b.astype(jnp.float32), ref, atol=1e-1, rtol=1e-1), \
        "bf16 mismatch vs reference"

    # Flag-gated bf16 matmul for f32 weights (f32 LN stats, f32 accumulate).
    out_m = prenorm_linear(x, gamma, beta, w, bias, bf16_matmul=True)
    jax.block_until_ready(out_m)
    assert out_m.shape == (B, N, DOUT)
    assert jnp.allclose(out_m.astype(jnp.float32), ref, atol=1e-1, rtol=1e-1), \
        "bf16-matmul mismatch vs reference"

    print("KERNEL_OK")
</pallas_src>

<mosaic_0001>
module attributes {stable_mosaic.version = 11 : i64} {
  func.func @_prenorm_linear_kernel(%arg0: i32, %arg1: i32, %arg2: memref<16x32xf32, #tpu.memory_space<vmem>>, %arg3: memref<1x32xf32, #tpu.memory_space<vmem>>, %arg4: memref<1x32xf32, #tpu.memory_space<vmem>>, %arg5: memref<32x128xf32, #tpu.memory_space<vmem>>, %arg6: memref<1x128xf32, #tpu.memory_space<vmem>>, %arg7: memref<16x128xf32, #tpu.memory_space<vmem>>, %arg8: memref<16x32xf32, #tpu.memory_space<vmem>>) attributes {dimension_semantics = [#tpu.dimension_semantics<parallel>, #tpu.dimension_semantics<arbitrary>], iteration_bounds = array<i64: 1, 1>, scalar_prefetch = 0 : i64, scratch_operands = 1 : i64, tpu.core_type = #tpu.core_type<tc>, window_params = [{transform_indices = @transform_0, window_bounds = array<i64: 16, 32>}, {pipeline_mode = #tpu.pipeline_mode<synchronous>, transform_indices = @transform_1, window_bounds = array<i64: 1, 32>}, {pipeline_mode = #tpu.pipeline_mode<synchronous>, transform_indices = @transform_2, window_bounds = array<i64: 1, 32>}, {transform_indices = @transform_3, window_bounds = array<i64: 32, 128>}, {transform_indices = @transform_4, window_bounds = array<i64: 1, 128>}, {transform_indices = @transform_5, window_bounds = array<i64: 16, 128>}]} {
    %c0_i32 = arith.constant 0 : i32
    %0 = arith.cmpi eq, %arg1, %c0_i32 : i32
    %1 = arith.extui %0 : i1 to i32
    %c0_i32_0 = arith.constant 0 : i32
    %2 = arith.cmpi ne, %1, %c0_i32_0 : i32
    scf.if %2 {
      %c0_8 = arith.constant 0 : index
      %c0_9 = arith.constant 0 : index
      %10 = vector.load %arg2[%c0_8, %c0_9] : memref<16x32xf32, #tpu.memory_space<vmem>>, vector<16x32xf32>
      %cst_10 = arith.constant dense<0.000000e+00> : vector<16xf32>
      %11 = vector.multi_reduction <add>, %10, %cst_10 [1] : vector<16x32xf32> to vector<16xf32>
      %12 = vector.shape_cast %11 : vector<16xf32> to vector<16x1xf32>
      %cst_11 = arith.constant 3.200000e+01 : f32
      %13 = vector.broadcast %cst_11 : f32 to vector<16x1xf32>
      %14 = arith.divf %12, %13 : vector<16x1xf32>
      %15 = vector.broadcast %14 : vector<16x1xf32> to vector<16x32xf32>
      %16 = arith.subf %10, %15 : vector<16x32xf32>
      %17 = arith.mulf %16, %16 : vector<16x32xf32>
      %cst_12 = arith.constant dense<0.000000e+00> : vector<16xf32>
      %18 = vector.multi_reduction <add>, %17, %cst_12 [1] : vector<16x32xf32> to vector<16xf32>
      %19 = vector.shape_cast %18 : vector<16xf32> to vector<16x1xf32>
      %cst_13 = arith.constant 3.200000e+01 : f32
      %20 = vector.broadcast %cst_13 : f32 to vector<16x1xf32>
      %21 = arith.divf %19, %20 : vector<16x1xf32>
      %cst_14 = arith.constant 9.99999974E-6 : f32
      %22 = vector.broadcast %cst_14 : f32 to vector<16x1xf32>
      %23 = arith.addf %21, %22 : vector<16x1xf32>
      %24 = math.rsqrt %23 : vector<16x1xf32>
      %25 = vector.broadcast %24 : vector<16x1xf32> to vector<16x32xf32>
      %26 = arith.mulf %16, %25 : vector<16x32xf32>
      %c0_15 = arith.constant 0 : index
      %c0_16 = arith.constant 0 : index
      %27 = vector.load %arg3[%c0_15, %c0_16] : memref<1x32xf32, #tpu.memory_space<vmem>>, vector<1x32xf32>
      %28 = vector.broadcast %27 : vector<1x32xf32> to vector<16x32xf32>
      %29 = arith.mulf %26, %28 : vector<16x32xf32>
      %c0_17 = arith.constant 0 : index
      %c0_18 = arith.constant 0 : index
      %30 = vector.load %arg4[%c0_17, %c0_18] : memref<1x32xf32, #tpu.memory_space<vmem>>, vector<1x32xf32>
      %31 = vector.broadcast %30 : vector<1x32xf32> to vector<16x32xf32>
      %32 = arith.addf %29, %31 : vector<16x32xf32>
      %c0_19 = arith.constant 0 : index
      %c0_20 = arith.constant 0 : index
      %33 = vector.load %arg8[%c0_19, %c0_20] : memref<16x32xf32, #tpu.memory_space<vmem>>, vector<16x32xf32>
      tpu.vector_store %arg8[%c0_19, %c0_20], %32 {strides = array<i32>} : memref<16x32xf32, #tpu.memory_space<vmem>>, vector<16x32xf32>,
    } else {
    }
    %c0 = arith.constant 0 : index
    %c0_1 = arith.constant 0 : index
    %3 = vector.load %arg8[%c0, %c0_1] : memref<16x32xf32, #tpu.memory_space<vmem>>, vector<16x32xf32>
    %c0_2 = arith.constant 0 : index
    %c0_3 = arith.constant 0 : index
    %4 = vector.load %arg5[%c0_2, %c0_3] : memref<32x128xf32, #tpu.memory_space<vmem>>, vector<32x128xf32>
    %cst = arith.constant dense<0.000000e+00> : vector<16x128xf32>
    %5 = tpu.matmul %3, %4, %cst {dimension_numbers = #tpu.dot_dimension_numbers<[1], [0], [0], [1], [0, 0, 1, 1], [], []>} : vector<16x32xf32>, vector<32x128xf32>, vector<16x128xf32> -> vector<16x128xf32>
    %c0_4 = arith.constant 0 : index
    %c0_5 = arith.constant 0 : index
    %6 = vector.load %arg6[%c0_4, %c0_5] : memref<1x128xf32, #tpu.memory_space<vmem>>, vector<1x128xf32>
    %7 = vector.broadcast %6 : vector<1x128xf32> to vector<16x128xf32>
    %8 = arith.addf %5, %7 : vector<16x128xf32>
    %c0_6 = arith.constant 0 : index
    %c0_7 = arith.constant 0 : index
    %9 = vector.load %arg7[%c0_6, %c0_7] : memref<16x128xf32, #tpu.memory_space<vmem>>, vector<16x128xf32>
    tpu.vector_store %arg7[%c0_6, %c0_7], %8 {strides = array<i32>} : memref<16x128xf32, #tpu.memory_space<vmem>>, vector<16x128xf32>,
    return
  }
  func.func @transform_0(%arg0: i32, %arg1: i32) -> (i32, i32) {
    %c0_i32 = arith.constant 0 : i32
    %c0_i32_0 = arith.constant 0 : i32
    return %arg0, %c0_i32 : i32, i32
  }
  func.func @transform_1(%arg0: i32, %arg1: i32) -> (i32, i32) {
    %c0_i32 = arith.constant 0 : i32
    %c0_i32_0 = arith.constant 0 : i32
    %c0_i32_1 = arith.constant 0 : i32
    return %c0_i32, %c0_i32_0 : i32, i32
  }
  func.func @transform_2(%arg0: i32, %arg1: i32) -> (i32, i32) {
    %c0_i32 = arith.constant 0 : i32
    %c0_i32_0 = arith.constant 0 : i32
    %c0_i32_1 = arith.constant 0 : i32
    return %c0_i32, %c0_i32_0 : i32, i32
  }
  func.func @transform_3(%arg0: i32, %arg1: i32) -> (i32, i32) {
    %c0_i32 = arith.constant 0 : i32
    %c0_i32_0 = arith.constant 0 : i32
    return %c0_i32, %arg1 : i32, i32
  }
  func.func @transform_4(%arg0: i32, %arg1: i32) -> (i32, i32) {
    %c0_i32 = arith.constant 0 : i32
    %c0_i32_0 = arith.constant 0 : i32
    return %c0_i32, %arg1 : i32, i32
  }
  func.func @transform_5(%arg0: i32, %arg1: i32) -> (i32, i32) {
    %c0_i32 = arith.constant 0 : i32
    return %arg0, %arg1 : i32, i32
  }
}

</mosaic_0001>

<llo_original>
// kernel: prenorm_linear.1
$region0: #{prenorm_linear.1}
  #allocation0 [shape = 'u32[]', space=smem, size = 0x4, offset = 0x4, fixed_abs, tag = 'smem constant byte address 0x4 - core index']
  #allocation1 [shape = 'u32[144,128]{1,0:T(1,128)}', space=vmem, size = 0x12000, scoped, tag = 'internal scratch']
  #allocation2 [shape = 'f32[16,32]{1,0:T(8,128)}', space=vmem, size = 0x2000, scoped, tag = 'scratch operand']
  %s0 = inlined_call_operand.vmem [shape: f32[16,32], index: 0, kind: input, shape index: {}]
  %s1 = inlined_call_operand.vmem [shape: f32[1,32], index: 1, kind: input, shape index: {}]
  %s2 = inlined_call_operand.vmem [shape: f32[1,32], index: 2, kind: input, shape index: {}]
  %s3 = inlined_call_operand.vmem [shape: f32[32,128], index: 3, kind: input, shape index: {}]
  %s4 = inlined_call_operand.vmem [shape: f32[1,128], index: 4, kind: input, shape index: {}]
  %s5 = inlined_call_operand.vmem [shape: f32[16,128], index: 5, kind: output, shape index: {}]
  %s6 = sld [smem:[#allocation0]]
  $region34: #{prenorm_linear.1} parent=0
    _
  %s8 = ssub.s32 1, %s6
  %s9 = scalar_select 0, %s8, %s6
  // Predicated region
  $region2: #{prenorm_linear.1} parent=0 // pred_check
    _
  $region3: #{prenorm_linear.1} parent=0 // pred_check_branch
    %11 = sbr.rel (0) target = $region5
  $region4: #{prenorm_linear.1} parent=0 // pred_region
    _
  $region5: #{prenorm_linear.1} parent=0 // pred_fallthru
    _
  // Predicated region
  $region6: #{prenorm_linear.1} parent=0 // pred_check
    _
  $region7: #{prenorm_linear.1} parent=0 // pred_check_branch
    %13 = sbr.rel (0) target = $region9
  $region8: #{prenorm_linear.1} parent=0 // pred_region
    _
  $region9: #{prenorm_linear.1} parent=0 // pred_fallthru
    _
  // Predicated region
  $region10: #{prenorm_linear.1} parent=0 // pred_check
    _
  $region11: #{prenorm_linear.1} parent=0 // pred_check_branch
    %15 = sbr.rel (0) target = $region13
  $region12: #{prenorm_linear.1} parent=0 // pred_region
    _
  $region13: #{prenorm_linear.1} parent=0 // pred_fallthru
    _
  // Predicated region
  $region14: #{prenorm_linear.1} parent=0 // pred_check
    _
  $region15: #{prenorm_linear.1} parent=0 // pred_check_branch
    %17 = sbr.rel (0) target = $region17
  $region16: #{prenorm_linear.1} parent=0 // pred_region
    _
  $region17: #{prenorm_linear.1} parent=0 // pred_fallthru
    _
  // Predicated region
  $region18: #{prenorm_linear.1} parent=0 // pred_check
    _
  $region19: #{prenorm_linear.1} parent=0 // pred_check_branch
    %19 = sbr.rel (0) target = $region21
  $region20: #{prenorm_linear.1} parent=0 // pred_region
    _
  $region21: #{prenorm_linear.1} parent=0 // pred_fallthru
    _
  %p20 = scmp.eq.s32.totalorder 0, 0
  // Predicated region
  $region22: #{prenorm_linear.1} parent=0 // pred_check
    %p21 = pneg %p20
  $region23: #{prenorm_linear.1} parent=0 // pred_check_branch
    %23 = sbr.rel (%p21) target = $region25
  $region24: #{prenorm_linear.1} parent=0 // pred_region
    %v24 = vld [vmem:[%s0] sm:$0xff]
    %v25 = vld [vmem:[%s0 + $0x8] sm:$0xff]
    %vm26 = vcmask 261120
    %v27 = vsel %vm26, %v24, 0.0
    %28 = vadd.xlane.f32.xlu0 %v27
    %v29 = vpop.xlane.xlu0 %28
    %v30 = vsel %vm26, %v25, 0.0
    %31 = vadd.xlane.f32.xlu0 %v30
    %v32 = vpop.xlane.xlu0 %31
    %v33 = vrcp.pop 32.0
    %v34 = vmul.f32 %v29, %v33
    %v35 = vmul.f32 %v32, %v33
    %v36 = vsub.f32 %v24, %v34
    %v37 = vsub.f32 %v25, %v35
    %v38 = vmul.f32 %v36, %v36
    %v39 = vmul.f32 %v37, %v37
    %v40 = vsel %vm26, %v38, 0.0
    %41 = vadd.xlane.f32.xlu0 %v40
    %v42 = vpop.xlane.xlu0 %41
    %v43 = vsel %vm26, %v39, 0.0
    %44 = vadd.xlane.f32.xlu0 %v43
    %v45 = vpop.xlane.xlu0 %44
    %v46 = vmul.f32 %v42, %v33
    %v47 = vmul.f32 %v45, %v33
    %v48 = vadd.f32 %v46, 1e-05
    %v49 = vadd.f32 %v47, 1e-05
    %v50 = vrsqrt.pop %v48
    %v51 = vrsqrt.pop %v49
    %v52 = vmul.f32 %v36, %v50
    %v53 = vmul.f32 %v37, %v51
    %v54 = vld [vmem:[%s1] sm:$0x1]
    %v56 = vlaneseq
    %v57 = vshrl.u32 %v56, 7
    %v58 = vsub.s32 0, %v57
    %v59 = vrot.slane %v54, %v58
    %v61 = vmul.f32 %v52, %v59
    %v62 = vmul.f32 %v53, %v59
    %v63 = vld [vmem:[%s2] sm:$0x1]
    %v65 = vlaneseq
    %v66 = vshrl.u32 %v65, 7
    %v67 = vsub.s32 0, %v66
    %v68 = vrot.slane %v63, %v67
    %v70 = vadd.f32 %v61, %v68
    %v71 = vadd.f32 %v62, %v68
    %72 = vst.msk [vmem:[#allocation2] sm:$0xff] %vm26, %v70
    %73 = vst.msk [vmem:[#allocation2 + $0x8] sm:$0xff] %vm26, %v71
  $region25: #{prenorm_linear.1} parent=0 // pred_fallthru
    _
  %v74 = vld [vmem:[#allocation2] sm:$0xff]
  %v75 = vld [vmem:[#allocation2 + $0x8] sm:$0xff]
  %v76 = vld [vmem:[%s3] sm:$0xff]
  %v77 = vld [vmem:[%s3 + $0x8] sm:$0xff]
  %v78 = vld [vmem:[%s3 + $0x10] sm:$0xff]
  %v79 = vld [vmem:[%s3 + $0x18] sm:$0xff]
  %v80 = vld [vmem:[%s4] sm:$0x1]
  %v82 = vlaneseq
  %v83 = vshrl.u32 %v82, 7
  %v84 = vsub.s32 0, %v83
  %v85 = vrot.slane %v80, %v84
  %vm87 = vcmask 261120
  %v89 = vsel %vm87, %v74, 0
  %v92 = vsel %vm87, %v75, 0
  %94 = vmatprep.subr.mxu0 0.0
  %95 = vmatpush1.msra.mxu0 0.0
  %96 = vmatprep.subr.mxu0 0.0
  %97 = vmatpush1.msra.mxu0 0.0
  %98 = vmatprep.subr.mxu0 0.0
  %99 = vmatpush1.msra.mxu0 0.0
  %100 = vmatprep.subr.mxu0 0.0
  %101 = vmatpush1.msra.mxu0 0.0
  %102 = vmatprep.subr.mxu0 0.0
  %103 = vmatpush1.msra.mxu0 0.0
  %104 = vmatprep.subr.mxu0 0.0
  %105 = vmatpush1.msra.mxu0 0.0
  %106 = vmatprep.subr.mxu0 0.0
  %107 = vmatpush1.msra.mxu0 0.0
  %108 = vmatprep.subr.mxu0 0.0
  %109 = vmatpush1.msra.mxu0 0.0
  %110 = vmatprep.subr.mxu0 0.0
  %111 = vmatpush1.msra.mxu0 0.0
  %112 = vmatprep.subr.mxu0 0.0
  %113 = vmatpush1.msra.mxu0 0.0
  %114 = vmatprep.subr.mxu0 0.0
  %115 = vmatpush1.msra.mxu0 0.0
  %116 = vmatprep.subr.mxu0 0.0
  %117 = vmatpush1.msra.mxu0 0.0
  %118 = vmatprep.subr.mxu0 0.0
  %119 = vmatpush1.msra.mxu0 %v79
  %120 = vmatprep.subr.mxu0 0.0
  %121 = vmatpush1.msra.mxu0 %v78
  %122 = vmatprep.subr.mxu0 0.0
  %123 = vmatpush1.msra.mxu0 %v77
  %124 = vmatprep.subr.mxu0 0.0
  %125 = vmatpush1.msra.mxu0 %v76
  %126 = vmatprep.subr.mxu0 0.0
  %127 = vmatpush2.msra.mxu0 0.0
  %128 = vmatprep.subr.mxu0 0.0
  %129 = vmatpush2.msra.mxu0 0.0
  %130 = vmatprep.subr.mxu0 0.0
  %131 = vmatpush2.msra.mxu0 0.0
  %132 = vmatprep.subr.mxu0 0.0
  %133 = vmatpush2.msra.mxu0 0.0
  %134 = vmatprep.subr.mxu0 0.0
  %135 = vmatpush2.msra.mxu0 0.0
  %136 = vmatprep.subr.mxu0 0.0
  %137 = vmatpush2.msra.mxu0 0.0
  %138 = vmatprep.subr.mxu0 0.0
  %139 = vmatpush2.msra.mxu0 0.0
  %140 = vmatprep.subr.mxu0 0.0
  %141 = vmatpush2.msra.mxu0 0.0
  %142 = vmatprep.subr.mxu0 0.0
  %143 = vmatpush2.msra.mxu0 0.0
  %144 = vmatprep.subr.mxu0 0.0
  %145 = vmatpush2.msra.mxu0 0.0
  %146 = vmatprep.subr.mxu0 0.0
  %147 = vmatpush2.msra.mxu0 0.0
  %148 = vmatprep.subr.mxu0 0.0
  %149 = vmatpush2.msra.mxu0 0.0
  %150 = vmatprep.subr.mxu0 0.0
  %151 = vmatpush2.msra.mxu0 0.0
  %152 = vmatprep.subr.mxu0 0.0
  %153 = vmatpush2.msra.mxu0 0.0
  %154 = vmatprep.subr.mxu0 0.0
  %155 = vmatpush2.msra.mxu0 0.0
  %156 = vmatprep.subr.mxu0 0.0
  %157 = vmatpush2.msra.mxu0 0.0
  %158 = vmatprep.mubr.f32.mxu0 0.0
  %159 = vmatmul.mubr.f32.gmra.mxu0 %v89
  %v160 = vpop.f32.mrf.mxu0
  %v161 = vadd.f32 %v85, %v160
  %v162 = vpop.f32.mrf.mxu0
  %163 = vmatprep.mubr.f32.mxu0 0.0
  %164 = vmatmul.mubr.f32.gmra.mxu0 %v92
  %v165 = vpop.f32.mrf.mxu0
  %v166 = vadd.f32 %v85, %v165
  %v167 = vpop.f32.mrf.mxu0
  %168 = vdwg.mxu0
  %169 = vst [vmem:[%s5] sm:$0xff] %v161
  %170 = vst [vmem:[%s5 + $0x8] sm:$0xff] %v166
  // Predicated region
  $region26: #{prenorm_linear.1} parent=0 // pred_check
    _
  $region27: #{prenorm_linear.1} parent=0 // pred_check_branch
    %172 = sbr.rel (0) target = $region29
  $region28: #{prenorm_linear.1} parent=0 // pred_region
    _
  $region29: #{prenorm_linear.1} parent=0 // pred_fallthru
    _
  // Predicated region
  $region30: #{prenorm_linear.1} parent=0 // pred_check
    _
  $region31: #{prenorm_linear.1} parent=0 // pred_check_branch
    %174 = sbr.rel (0) target = $region33
  $region32: #{prenorm_linear.1} parent=0 // pred_region
    _
  $region33: #{prenorm_linear.1} parent=0 // pred_fallthru
    _

</llo_original>
